<compile_context>
chip_gen: v5e
topology: v5e:2x2
jax: 0.10.0
libtpu: 0.0.40
codegen_flags: <defaults>
</compile_context>

<pallas_src>
import jax
import jax.numpy as jnp
from jax.experimental import pallas as pl
from jax.experimental.pallas import tpu as pltpu


def _round_up(n, m):
    return ((n + m - 1) // m) * m


def simplenet_kernel(x_ref, w1_ref, b1_ref, w2_ref, b2_ref, o_ref):
    # fc1: cast raw f32 x to bf16 on the VPU (hidden under DMA/MXU), MXU matmul
    # with f32 accumulation; bias + ReLU in f32.
    x = x_ref[...].astype(jnp.bfloat16)
    h = jnp.dot(x, w1_ref[...], preferred_element_type=jnp.float32)
    h = jnp.maximum(h + b1_ref[...], 0.0)

    # Dropout(p=0.2): eval-mode semantics => identity.
    # TODO(synk): training-mode dropout would need pltpu.prng_seed/prng_random_bits
    # masking plus 1/(1-p) scaling.

    # fc2: bf16 activations on the MXU, f32 accumulate; sigmoid via EUP
    # (exp + approx reciprocal) on the narrow, unpadded output.
    y = jnp.dot(h.astype(jnp.bfloat16), w2_ref[...],
                preferred_element_type=jnp.float32)
    y = y + b2_ref[...]
    o_ref[...] = pl.reciprocal(1.0 + jnp.exp(-y), approx=True).astype(o_ref.dtype)


def prepare_params(w1, b1, w2, b2):
    """One-time parameter preparation (pad hidden dim to 128 lanes, cast MXU
    operands to bf16).  Do NOT call this per-forward; its cost is paid once.

    w1:(I,H) b1:(1,H) w2:(H,O) b2:(1,O)  (weights transposed vs. nn.Linear).
    Returns (w1p:(I,Hp) bf16, b1p:(1,Hp) f32, w2p:(Hp,O) bf16, b2p:(1,O) f32).
    """
    input_dim, hidden_dim = w1.shape
    output_dim = w2.shape[1]
    h_pad = _round_up(hidden_dim, 128)

    w1p = jnp.zeros((input_dim, h_pad), jnp.bfloat16).at[:, :hidden_dim].set(
        w1.astype(jnp.bfloat16))
    b1p = jnp.zeros((1, h_pad), jnp.float32).at[:, :hidden_dim].set(
        b1.astype(jnp.float32))
    # Padded hidden columns of h are relu(0 + 0) = 0 and the matching padded
    # rows of w2p are 0, so fc2 is unaffected by the padding.
    w2p = jnp.zeros((h_pad, output_dim), jnp.bfloat16).at[:hidden_dim, :].set(
        w2.astype(jnp.bfloat16))
    b2p = b2.astype(jnp.float32).reshape(1, output_dim)
    return w1p, b1p, w2p, b2p


def simplenet_forward(x, w1p, b1p, w2p, b2p, *, tile_b=None):
    """SimpleNet forward.  x:(B,I) f32; params from prepare_params()."""
    batch, input_dim = x.shape
    assert w1p.shape[0] == input_dim, "x feature dim must match w1p"
    h_pad = w1p.shape[1]
    output_dim = w2p.shape[1]

    # Batch tile: large enough to amortize per-grid-step overhead, but aim for
    # >= 2 grid steps so a 2-TC chip (v7x) can shard the parallel batch axis.
    if tile_b is None:
        tile_b = max(8, min(1024, _round_up(pl.cdiv(batch, 2), 8)))
    else:
        tile_b = max(8, _round_up(tile_b, 8))

    grid = (pl.cdiv(batch, tile_b),)   # ragged last block handled by Pallas

    x_bytes = x.size * 4
    param_bytes = (w1p.size * 2 + b1p.size * 4 + w2p.size * 2 + b2p.size * 4)
    out_bytes = batch * output_dim * 4

    cost = pl.CostEstimate(
        flops=2 * batch * (input_dim * h_pad + h_pad * output_dim),
        transcendentals=batch * output_dim,                    # sigmoid exp
        bytes_accessed=x_bytes + param_bytes + out_bytes,
    )

    # VMEM budget: resident params + double-buffered x/out tiles + f32 hidden
    # activations; only raise the scoped limit when we actually need it.
    vmem_need = (param_bytes
                 + 2 * tile_b * (input_dim * 4 + output_dim * 4)
                 + 2 * tile_b * h_pad * 4)
    vmem_limit = None
    if vmem_need > 16 * 2**20:
        vmem_limit = int(min(48 * 2**20, max(32 * 2**20, 2 * vmem_need)))

    return pl.pallas_call(
        simplenet_kernel,
        out_shape=jax.ShapeDtypeStruct((batch, output_dim), jnp.float32),
        grid_spec=pltpu.PrefetchScalarGridSpec(
            num_scalar_prefetch=0,
            grid=grid,
            in_specs=[
                pl.BlockSpec((tile_b, input_dim), lambda i: (i, 0)),  # x: raw f32, batch-tiled
                pl.BlockSpec((input_dim, h_pad), lambda i: (0, 0)),   # W1: resident bf16
                pl.BlockSpec((1, h_pad), lambda i: (0, 0)),           # b1: resident f32
                pl.BlockSpec((h_pad, output_dim), lambda i: (0, 0)),  # W2: resident bf16
                pl.BlockSpec((1, output_dim), lambda i: (0, 0)),      # b2: resident f32
            ],
            out_specs=pl.BlockSpec((tile_b, output_dim), lambda i: (i, 0)),
        ),
        compiler_params=pltpu.CompilerParams(
            dimension_semantics=("parallel",),                        # megacore on v7x
            vmem_limit_bytes=vmem_limit),
        cost_estimate=cost,
    )(x, w1p, b1p, w2p, b2p)


def init_params(key, input_dim, hidden_dim, output_dim):
    """Deterministic init mimicking nn.Linear default (U(-1/sqrt(fan_in), 1/sqrt(fan_in)))."""
    k1, k2, k3, k4 = jax.random.split(key, 4)
    bound1 = 1.0 / (input_dim ** 0.5)
    bound2 = 1.0 / (hidden_dim ** 0.5)
    w1 = jax.random.uniform(k1, (input_dim, hidden_dim), jnp.float32, -bound1, bound1)
    b1 = jax.random.uniform(k2, (1, hidden_dim), jnp.float32, -bound1, bound1)
    w2 = jax.random.uniform(k3, (hidden_dim, output_dim), jnp.float32, -bound2, bound2)
    b2 = jax.random.uniform(k4, (1, output_dim), jnp.float32, -bound2, bound2)
    return w1, b1, w2, b2


if __name__ == "__main__":
    batch, input_dim, hidden_dim, output_dim = 8, 16, 32, 1

    key = jax.random.PRNGKey(0)
    k_x, k_p = jax.random.split(key)
    x = jax.random.normal(k_x, (batch, input_dim), jnp.float32)
    w1, b1, w2, b2 = init_params(k_p, input_dim, hidden_dim, output_dim)

    # One-time parameter preparation (padding + bf16 cast) — hoisted out of forward.
    w1p, b1p, w2p, b2p = prepare_params(w1, b1, w2, b2)

    out = simplenet_forward(x, w1p, b1p, w2p, b2p)
    jax.block_until_ready(out)
    assert out.shape == (batch, output_dim)

    # Reference with the same bf16-input / f32-accumulate matmul path.
    h_ref = jnp.maximum(
        jnp.dot(x.astype(jnp.bfloat16), w1.astype(jnp.bfloat16),
                preferred_element_type=jnp.float32) + b1, 0.0)
    ref_bf16 = jax.nn.sigmoid(
        jnp.dot(h_ref.astype(jnp.bfloat16), w2.astype(jnp.bfloat16),
                preferred_element_type=jnp.float32) + b2)
    # Pure-f32 reference (loose tolerance: kernel feeds bf16 to the MXU).
    ref_f32 = jax.nn.sigmoid(jnp.maximum(x @ w1 + b1, 0.0) @ w2 + b2)

    assert jnp.allclose(out, ref_bf16, atol=5e-3, rtol=5e-3), "mismatch vs bf16-matched reference"
    assert jnp.allclose(out, ref_f32, atol=3e-2, rtol=3e-2), "mismatch vs f32 reference"

    print("KERNEL_OK")
</pallas_src>

<mosaic_0001>
module attributes {stable_mosaic.version = 11 : i64} {
  func.func @simplenet_kernel(%arg0: i32, %arg1: memref<8x16xf32, #tpu.memory_space<vmem>>, %arg2: memref<16x128xbf16, #tpu.memory_space<vmem>>, %arg3: memref<1x128xf32, #tpu.memory_space<vmem>>, %arg4: memref<128x1xbf16, #tpu.memory_space<vmem>>, %arg5: memref<1x1xf32, #tpu.memory_space<vmem>>, %arg6: memref<8x1xf32, #tpu.memory_space<vmem>>) attributes {dimension_semantics = [#tpu.dimension_semantics<parallel>], iteration_bounds = array<i64: 1>, scalar_prefetch = 0 : i64, scratch_operands = 0 : i64, tpu.core_type = #tpu.core_type<tc>, window_params = [{transform_indices = @transform_0, window_bounds = array<i64: 8, 16>}, {pipeline_mode = #tpu.pipeline_mode<synchronous>, transform_indices = @transform_1, window_bounds = array<i64: 16, 128>}, {pipeline_mode = #tpu.pipeline_mode<synchronous>, transform_indices = @transform_2, window_bounds = array<i64: 1, 128>}, {pipeline_mode = #tpu.pipeline_mode<synchronous>, transform_indices = @transform_3, window_bounds = array<i64: 128, 1>}, {pipeline_mode = #tpu.pipeline_mode<synchronous>, transform_indices = @transform_4, window_bounds = array<i64: 1, 1>}, {transform_indices = @transform_5, window_bounds = array<i64: 8, 1>}]} {
    %c0 = arith.constant 0 : index
    %c0_0 = arith.constant 0 : index
    %0 = vector.load %arg1[%c0, %c0_0] : memref<8x16xf32, #tpu.memory_space<vmem>>, vector<8x16xf32>
    %1 = arith.truncf %0 : vector<8x16xf32> to vector<8x16xbf16>
    %c0_1 = arith.constant 0 : index
    %c0_2 = arith.constant 0 : index
    %2 = vector.load %arg2[%c0_1, %c0_2] : memref<16x128xbf16, #tpu.memory_space<vmem>>, vector<16x128xbf16>
    %cst = arith.constant dense<0.000000e+00> : vector<8x128xf32>
    %3 = tpu.matmul %1, %2, %cst {dimension_numbers = #tpu.dot_dimension_numbers<[1], [0], [0], [1], [0, 0, 1, 1], [], []>} : vector<8x16xbf16>, vector<16x128xbf16>, vector<8x128xf32> -> vector<8x128xf32>
    %c0_3 = arith.constant 0 : index
    %c0_4 = arith.constant 0 : index
    %4 = vector.load %arg3[%c0_3, %c0_4] : memref<1x128xf32, #tpu.memory_space<vmem>>, vector<1x128xf32>
    %5 = vector.broadcast %4 : vector<1x128xf32> to vector<8x128xf32>
    %6 = arith.addf %3, %5 : vector<8x128xf32>
    %cst_5 = arith.constant 0.000000e+00 : f32
    %7 = vector.broadcast %cst_5 : f32 to vector<8x128xf32>
    %8 = arith.maximumf %6, %7 : vector<8x128xf32>
    %9 = arith.truncf %8 : vector<8x128xf32> to vector<8x128xbf16>
    %c0_6 = arith.constant 0 : index
    %c0_7 = arith.constant 0 : index
    %10 = vector.load %arg4[%c0_6, %c0_7] : memref<128x1xbf16, #tpu.memory_space<vmem>>, vector<128x1xbf16>
    %cst_8 = arith.constant dense<0.000000e+00> : vector<8x1xf32>
    %11 = tpu.matmul %9, %10, %cst_8 {dimension_numbers = #tpu.dot_dimension_numbers<[1], [0], [0], [1], [0, 0, 1, 1], [], []>} : vector<8x128xbf16>, vector<128x1xbf16>, vector<8x1xf32> -> vector<8x1xf32>
    %c0_9 = arith.constant 0 : index
    %c0_10 = arith.constant 0 : index
    %12 = vector.load %arg5[%c0_9, %c0_10] : memref<1x1xf32, #tpu.memory_space<vmem>>, vector<1x1xf32>
    %13 = vector.broadcast %12 : vector<1x1xf32> to vector<8x1xf32>
    %14 = arith.addf %11, %13 : vector<8x1xf32>
    %cst_11 = arith.constant 0.000000e+00 : f32
    %15 = vector.broadcast %cst_11 : f32 to vector<8x1xf32>
    %16 = arith.subf %15, %14 : vector<8x1xf32>
    %17 = math.exp %16 : vector<8x1xf32>
    %cst_12 = arith.constant 1.000000e+00 : f32
    %18 = vector.broadcast %cst_12 : f32 to vector<8x1xf32>
    %19 = arith.addf %18, %17 : vector<8x1xf32>
    %20 = tpu.reciprocal %19 {approx = true} : vector<8x1xf32> -> vector<8x1xf32>
    %c0_13 = arith.constant 0 : index
    %c0_14 = arith.constant 0 : index
    %21 = vector.load %arg6[%c0_13, %c0_14] : memref<8x1xf32, #tpu.memory_space<vmem>>, vector<8x1xf32>
    tpu.vector_store %arg6[%c0_13, %c0_14], %20 {strides = array<i32>} : memref<8x1xf32, #tpu.memory_space<vmem>>, vector<8x1xf32>,
    return
  }
  func.func @transform_0(%arg0: i32) -> (i32, i32) {
    %c0_i32 = arith.constant 0 : i32
    %c0_i32_0 = arith.constant 0 : i32
    return %arg0, %c0_i32 : i32, i32
  }
  func.func @transform_1(%arg0: i32) -> (i32, i32) {
    %c0_i32 = arith.constant 0 : i32
    %c0_i32_0 = arith.constant 0 : i32
    %c0_i32_1 = arith.constant 0 : i32
    return %c0_i32, %c0_i32_0 : i32, i32
  }
  func.func @transform_2(%arg0: i32) -> (i32, i32) {
    %c0_i32 = arith.constant 0 : i32
    %c0_i32_0 = arith.constant 0 : i32
    %c0_i32_1 = arith.constant 0 : i32
    return %c0_i32, %c0_i32_0 : i32, i32
  }
  func.func @transform_3(%arg0: i32) -> (i32, i32) {
    %c0_i32 = arith.constant 0 : i32
    %c0_i32_0 = arith.constant 0 : i32
    %c0_i32_1 = arith.constant 0 : i32
    return %c0_i32, %c0_i32_0 : i32, i32
  }
  func.func @transform_4(%arg0: i32) -> (i32, i32) {
    %c0_i32 = arith.constant 0 : i32
    %c0_i32_0 = arith.constant 0 : i32
    %c0_i32_1 = arith.constant 0 : i32
    return %c0_i32, %c0_i32_0 : i32, i32
  }
  func.func @transform_5(%arg0: i32) -> (i32, i32) {
    %c0_i32 = arith.constant 0 : i32
    %c0_i32_0 = arith.constant 0 : i32
    return %arg0, %c0_i32 : i32, i32
  }
}

</mosaic_0001>

<llo_original>
// kernel: tpu_custom_call.1
$region0: #{tpu_custom_call.1}
  #allocation0 [shape = 'u32[]', space=smem, size = 0x4, offset = 0x4, fixed_abs, tag = 'smem constant byte address 0x4 - core index']
  #allocation1 [shape = 'u32[72,128]{1,0:T(1,128)}', space=vmem, size = 0x9000, scoped, tag = 'internal scratch']
  #allocation2 [shape = 'f32[1,1]{1,0:T(1,128)S(1)}', space=vmem, size = 0x200, scoped, tag = 'scoped memory for tpu_custom_call.1']
  %s0 = inlined_call_operand.vmem [shape: f32[8,16], index: 0, kind: input, shape index: {}]
  %s1 = inlined_call_operand.vmem [shape: bf16[16,128], index: 1, kind: input, shape index: {}]
  %s2 = inlined_call_operand.vmem [shape: f32[1,128], index: 2, kind: input, shape index: {}]
  %s3 = inlined_call_operand.vmem [shape: bf16[128,1], index: 3, kind: input, shape index: {}]
  %s4 = inlined_call_operand.<no memory space> [shape: f32[1,1], index: 4, kind: input, shape index: {}]
  %s5 = inlined_call_operand.vmem [shape: f32[8,1], index: 5, kind: output, shape index: {}]
  %s6 = sld [smem:[#allocation0]]
  $region30: #{tpu_custom_call.1} parent=0
    _
  %s8 = ssub.s32 1, %s6
  %s9 = scalar_select 0, %s8, %s6
  %v10 = vstv %s4
  %11 = vst [vmem:[#allocation2] sm:$0x1] %v10
  // Predicated region
  $region2: #{tpu_custom_call.1} parent=0 // pred_check
    _
  $region3: #{tpu_custom_call.1} parent=0 // pred_check_branch
    %13 = sbr.rel (0) target = $region5
  $region4: #{tpu_custom_call.1} parent=0 // pred_region
    _
  $region5: #{tpu_custom_call.1} parent=0 // pred_fallthru
    _
  // Predicated region
  $region6: #{tpu_custom_call.1} parent=0 // pred_check
    _
  $region7: #{tpu_custom_call.1} parent=0 // pred_check_branch
    %15 = sbr.rel (0) target = $region9
  $region8: #{tpu_custom_call.1} parent=0 // pred_region
    _
  $region9: #{tpu_custom_call.1} parent=0 // pred_fallthru
    _
  // Predicated region
  $region10: #{tpu_custom_call.1} parent=0 // pred_check
    _
  $region11: #{tpu_custom_call.1} parent=0 // pred_check_branch
    %17 = sbr.rel (0) target = $region13
  $region12: #{tpu_custom_call.1} parent=0 // pred_region
    _
  $region13: #{tpu_custom_call.1} parent=0 // pred_fallthru
    _
  // Predicated region
  $region14: #{tpu_custom_call.1} parent=0 // pred_check
    _
  $region15: #{tpu_custom_call.1} parent=0 // pred_check_branch
    %19 = sbr.rel (0) target = $region17
  $region16: #{tpu_custom_call.1} parent=0 // pred_region
    _
  $region17: #{tpu_custom_call.1} parent=0 // pred_fallthru
    _
  // Predicated region
  $region18: #{tpu_custom_call.1} parent=0 // pred_check
    _
  $region19: #{tpu_custom_call.1} parent=0 // pred_check_branch
    %21 = sbr.rel (0) target = $region21
  $region20: #{tpu_custom_call.1} parent=0 // pred_region
    _
  $region21: #{tpu_custom_call.1} parent=0 // pred_fallthru
    _
  %v23 = vld [vmem:[%s0] sm:$0xff]
  %v24 = vpack.c.bf16 %v23, %v23
  %v25 = vld [vmem:[%s1] sm:$0xf]
  %v26 = vld [vmem:[%s1 + $0x4] sm:$0xf]
  %v27 = vld [vmem:[%s2] sm:$0x1]
  %v29 = vperm.slane %v27, 0
  %v33 = vunpack.c.l.b16 %v25
  %v34 = vunpack.c.l.b16 %v26
  %v35 = vpack.c.b16 %v34, %v33
  %vm37 = vcmask 130048
  %v39 = vsel %vm37, %v24, 0
  %41 = vmatpush.bf16.msra.mxu0 0
  %42 = vmatpush.bf16.msra.mxu0 0
  %43 = vmatpush.bf16.msra.mxu0 0
  %44 = vmatpush.bf16.msra.mxu0 0
  %45 = vmatpush.bf16.msra.mxu0 0
  %46 = vmatpush.bf16.msra.mxu0 0
  %47 = vmatpush.bf16.msra.mxu0 0
  %48 = vmatpush.bf16.msra.mxu0 %v35
  %49 = vmatmul.bf16.gmra.mxu0 %v39
  %v50 = vpop.f32.mrf.mxu0
  %v51 = vadd.f32 %v29, %v50
  %v52 = vpop.f32.mrf.mxu0
  %53 = vdwg.mxu0
  %v54 = vmax.f32 %v51, 0.0
  %v55 = vpack.c.bf16 %v54, %v54
  %v56 = vld [vmem:[%s3] sm:$0xf]
  %v57 = vld [vmem:[%s3 + $0x4] sm:$0xf]
  %v58 = vld [vmem:[%s3 + $0x8] sm:$0xf]
  %v59 = vld [vmem:[%s3 + $0xc] sm:$0xf]
  %v60 = vld [vmem:[%s3 + $0x10] sm:$0xf]
  %v61 = vld [vmem:[%s3 + $0x14] sm:$0xf]
  %v62 = vld [vmem:[%s3 + $0x18] sm:$0xf]
  %v63 = vld [vmem:[%s3 + $0x1c] sm:$0xf]
  %v64 = vld [vmem:[%s3 + $0x20] sm:$0xf]
  %v65 = vld [vmem:[%s3 + $0x24] sm:$0xf]
  %v66 = vld [vmem:[%s3 + $0x28] sm:$0xf]
  %v67 = vld [vmem:[%s3 + $0x2c] sm:$0xf]
  %v68 = vld [vmem:[%s3 + $0x30] sm:$0xf]
  %v69 = vld [vmem:[%s3 + $0x34] sm:$0xf]
  %v70 = vld [vmem:[%s3 + $0x38] sm:$0xf]
  %v71 = vld [vmem:[%s3 + $0x3c] sm:$0xf]
  %v72 = vld [vmem:[#allocation2] sm:$0x1]
  %v74 = vperm.slane %v72, 0
  %v92 = vunpack.c.l.b16 %v56
  %v93 = vunpack.c.l.b16 %v57
  %v94 = vunpack.c.l.b16 %v58
  %v95 = vunpack.c.l.b16 %v59
  %v96 = vunpack.c.l.b16 %v60
  %v97 = vunpack.c.l.b16 %v61
  %v98 = vunpack.c.l.b16 %v62
  %v99 = vunpack.c.l.b16 %v63
  %v100 = vunpack.c.l.b16 %v64
  %v101 = vunpack.c.l.b16 %v65
  %v102 = vunpack.c.l.b16 %v66
  %v103 = vunpack.c.l.b16 %v67
  %v104 = vunpack.c.l.b16 %v68
  %v105 = vunpack.c.l.b16 %v69
  %v106 = vunpack.c.l.b16 %v70
  %v107 = vunpack.c.l.b16 %v71
  %v108 = vpack.c.b16 %v93, %v92
  %v109 = vpack.c.b16 %v95, %v94
  %v110 = vpack.c.b16 %v97, %v96
  %v111 = vpack.c.b16 %v99, %v98
  %v112 = vpack.c.b16 %v101, %v100
  %v113 = vpack.c.b16 %v103, %v102
  %v114 = vpack.c.b16 %v105, %v104
  %v115 = vpack.c.b16 %v107, %v106
  %124 = vmatpush.bf16.msra.mxu0 %v115
  %125 = vmatpush.bf16.msra.mxu0 %v114
  %126 = vmatpush.bf16.msra.mxu0 %v113
  %127 = vmatpush.bf16.msra.mxu0 %v112
  %128 = vmatpush.bf16.msra.mxu0 %v111
  %129 = vmatpush.bf16.msra.mxu0 %v110
  %130 = vmatpush.bf16.msra.mxu0 %v109
  %131 = vmatpush.bf16.msra.mxu0 %v108
  %132 = vmatmul.bf16.gmra.mxu0 %v55
  %v133 = vpop.f32.mrf.mxu0
  %v134 = vadd.f32 %v74, %v133
  %v135 = vpop.f32.mrf.mxu0
  %136 = vdwg.mxu0
  %v137 = vsub.f32 0.0, %v134
  %v138 = vmul.f32 %v137, 1.442695
  %v139 = vpow.pop %v138
  %v140 = vadd.f32 %v139, 1.0
  %v141 = vrcp.pop %v140
  %vm142 = vcmask 7168
  %143 = vst.msk [vmem:[%s5] sm:$0xff] %vm142, %v141
  // Predicated region
  $region22: #{tpu_custom_call.1} parent=0 // pred_check
    _
  $region23: #{tpu_custom_call.1} parent=0 // pred_check_branch
    %145 = sbr.rel (0) target = $region25
  $region24: #{tpu_custom_call.1} parent=0 // pred_region
    _
  $region25: #{tpu_custom_call.1} parent=0 // pred_fallthru
    _
  // Predicated region
  $region26: #{tpu_custom_call.1} parent=0 // pred_check
    _
  $region27: #{tpu_custom_call.1} parent=0 // pred_check_branch
    %147 = sbr.rel (0) target = $region29
  $region28: #{tpu_custom_call.1} parent=0 // pred_region
    _
  $region29: #{tpu_custom_call.1} parent=0 // pred_fallthru
    _

</llo_original>
